<compile_context>
chip_gen: v7x
topology: tpu7x:2x2x1
jax: 0.10.0
libtpu: 0.0.40
codegen_flags: <defaults>
</compile_context>

<pallas_src>
import functools

import jax
import jax.numpy as jnp
from jax.experimental import pallas as pl
from jax.experimental.pallas import tpu as pltpu

LN_EPS = 1e-12


def _round_up(x, m):
    return (x + m - 1) // m * m


def _cdiv(a, b):
    return -(-a // b)


def _vmem_cap_bytes():
    """Generation-aware scoped-VMEM cap (always leaves compiler headroom)."""
    cap = 48 << 20                       # safe everywhere (v7x: 64 MiB physical)
    try:
        phys = int(pltpu.get_tpu_info().vmem_capacity_bytes)
        if phys > (64 << 20):            # v5e / v6e: 128 MiB parts -> allow big tiles
            cap = min(phys - (16 << 20), 100 << 20)
        else:                            # v7x: 64 MiB per TensorCore
            cap = min(phys - (8 << 20), 48 << 20)
    except Exception:
        pass
    return cap


def _bert_output_kernel(x_ref, w_ref, res_ref, p_ref, out_ref, *, eps, matmul_dtype):
    """One token tile per grid step: (x @ W) + bias + residual, then LayerNorm.

    W has a constant block index -> fetched once and kept resident in VMEM.
    Grid is 1-D over token tiles ("parallel" -> shardable across TensorCores).
    """
    x = x_ref[...].astype(matmul_dtype)            # in-kernel cast, no wrapper pass
    w = w_ref[...].astype(matmul_dtype)            # no-op: W is pre-cast outside jit
    h = jnp.dot(x, w, preferred_element_type=jnp.float32)

    p = p_ref[...]                                 # (3, H) f32: bias / gamma / beta
    # dense bias + residual add.  Dropout is identity at inference.
    # TODO(synk): training-mode dropout (hidden_dropout_prob) not implemented.
    h = h + p[0:1, :] + res_ref[...].astype(jnp.float32)

    # LayerNorm over the hidden dim (f32 epilogue).
    mean = jnp.mean(h, axis=-1, keepdims=True)
    c = h - mean
    var = jnp.mean(c * c, axis=-1, keepdims=True)
    h = c * jax.lax.rsqrt(var + eps)
    out_ref[...] = (h * p[1:2, :] + p[2:3, :]).astype(out_ref.dtype)


@functools.partial(jax.jit, static_argnames=("tm", "matmul_dtype", "out_dtype"))
def bert_output(hidden_states, input_tensor, w, b, gamma, beta,
                *, tm=512, matmul_dtype=jnp.bfloat16, out_dtype=None):
    """hidden_states: (B, S, I); input_tensor: (B, S, H); w: (I, H) = dense.weight^T.

    Returns LayerNorm(hidden_states @ w + b + input_tensor) as (B, S, H).
    Pass w pre-cast to bf16 (done once, outside this jitted call) for best perf.
    """
    B, S, I = hidden_states.shape
    H = w.shape[1]
    T = B * S
    if out_dtype is None:
        out_dtype = input_tensor.dtype

    x2 = hidden_states.reshape(T, I)               # native dtype, no extra HBM pass
    res2 = input_tensor.reshape(T, H)              # native dtype
    w_c = w

    # Pad the contraction dim to a lane multiple only when needed (real BERT
    # shapes have I % 128 == 0, so this is a no-op there).
    Ip = _round_up(I, 128)
    if Ip != I:
        x2 = jnp.pad(x2, ((0, 0), (0, Ip - I)))
        w_c = jnp.pad(w_c, ((0, Ip - I), (0, 0)))

    x_bytes = x2.dtype.itemsize
    w_bytes = w_c.dtype.itemsize
    res_bytes = res2.dtype.itemsize
    out_bytes = jnp.dtype(out_dtype).itemsize

    cap = _vmem_cap_bytes()

    def vmem_est(tm_):
        return (2 * tm_ * Ip * x_bytes             # x tile (double buffered)
                + 2 * Ip * H * w_bytes             # resident W (counted 2x, conservative)
                + 2 * tm_ * H * res_bytes          # residual tile
                + 2 * tm_ * H * out_bytes          # output tile
                + 2 * 3 * H * 4)                   # bias / gamma / beta

    # Token-tile size: as large as the VMEM budget allows.
    tm_eff = min(tm, _round_up(T, 8))
    while vmem_est(tm_eff) + (4 << 20) > cap and tm_eff > 8:
        tm_eff = max(8, _round_up(tm_eff // 2, 8))
    # TODO(synk): if W alone ever exceeds the VMEM cap, reintroduce a trailing
    # k reduction axis with an f32 accumulator (not needed for BERT shapes).

    # Megacore: prefer an even number (>= 2) of token tiles so both v7x
    # TensorCores get balanced work on the "parallel" axis.
    n_tiles = _cdiv(T, tm_eff)
    if n_tiles % 2 == 1 and T > 8:
        tm_try = _round_up(_cdiv(T, n_tiles + 1), 8)
        if tm_try >= 8 and _cdiv(T, tm_try) % 2 == 0:
            tm_eff = tm_try

    Tp = _round_up(T, tm_eff)
    if Tp != T:
        x2 = jnp.pad(x2, ((0, Tp - T), (0, 0)))
        res2 = jnp.pad(res2, ((0, Tp - T), (0, 0)))

    # Single (3, H) f32 constants slab: dense bias, LN gamma, LN beta.
    params = jnp.stack([b.astype(jnp.float32),
                        gamma.astype(jnp.float32),
                        beta.astype(jnp.float32)], axis=0)

    grid = (Tp // tm_eff,)

    cost = pl.CostEstimate(
        flops=2 * Tp * Ip * H,
        transcendentals=Tp,                        # one rsqrt per row
        bytes_accessed=(Tp * Ip * x_bytes          # x read once
                        + Ip * H * w_bytes         # W read once (resident)
                        + Tp * H * res_bytes       # residual read
                        + Tp * H * out_bytes       # output write
                        + 3 * H * 4))              # constants

    vmem_limit = int(min(cap, max(32 << 20, vmem_est(tm_eff) + (4 << 20))))

    kernel = functools.partial(_bert_output_kernel, eps=LN_EPS,
                               matmul_dtype=matmul_dtype)

    out = pl.pallas_call(
        kernel,
        out_shape=jax.ShapeDtypeStruct((Tp, H), out_dtype),
        grid_spec=pltpu.PrefetchScalarGridSpec(
            num_scalar_prefetch=0,
            grid=grid,
            in_specs=[
                pl.BlockSpec((tm_eff, Ip), lambda i: (i, 0)),   # x token tile
                pl.BlockSpec((Ip, H), lambda i: (0, 0)),        # W, resident in VMEM
                pl.BlockSpec((tm_eff, H), lambda i: (i, 0)),    # residual tile
                pl.BlockSpec((3, H), lambda i: (0, 0)),         # bias/gamma/beta
            ],
            out_specs=pl.BlockSpec((tm_eff, H), lambda i: (i, 0)),
        ),
        compiler_params=pltpu.CompilerParams(
            dimension_semantics=("parallel",),
            vmem_limit_bytes=vmem_limit),
        cost_estimate=cost,
    )(x2, w_c, res2, params)

    return out[:T].reshape(B, S, H)


def _reference(hidden_states, input_tensor, w, b, gamma, beta):
    h = hidden_states @ w + b
    h = h + input_tensor
    mean = jnp.mean(h, axis=-1, keepdims=True)
    var = jnp.mean((h - mean) ** 2, axis=-1, keepdims=True)
    h = (h - mean) * jax.lax.rsqrt(var + LN_EPS)
    return h * gamma + beta


if __name__ == "__main__":
    # Small shapes consistent with BertOutput: intermediate_size=512, hidden=128.
    B, S, I, H = 2, 8, 512, 128

    key = jax.random.PRNGKey(0)
    kx, kr, kw, kb, kg, kbe = jax.random.split(key, 6)

    hidden_states = jax.random.normal(kx, (B, S, I), dtype=jnp.float32)
    input_tensor = jax.random.normal(kr, (B, S, H), dtype=jnp.float32)

    # Parameters (shapes from BertOutput.__init__); dense weight pre-transposed.
    w = jax.random.normal(kw, (I, H), dtype=jnp.float32) * 0.02         # dense.weight^T
    b = jax.random.normal(kb, (H,), dtype=jnp.float32) * 0.02           # dense.bias
    gamma = 1.0 + 0.1 * jax.random.normal(kg, (H,), dtype=jnp.float32)  # LN weight
    beta = 0.1 * jax.random.normal(kbe, (H,), dtype=jnp.float32)        # LN bias

    # Pre-cast the weight once, OUTSIDE the jitted forward (avoids an I*H
    # read+write on every call; kernel then uses it as-is).
    w_bf16 = w.astype(jnp.bfloat16)

    out = bert_output(hidden_states, input_tensor, w_bf16, b, gamma, beta)
    out = jax.block_until_ready(out)

    ref = _reference(hidden_states, input_tensor, w, b, gamma, beta)
    assert out.shape == (B, S, H)
    max_err = float(jnp.max(jnp.abs(out - ref)))
    # bf16 matmul operands with f32 accumulation -> ~1e-3 scale error post-LN.
    assert jnp.allclose(out, ref, atol=3e-2, rtol=3e-2), f"mismatch vs reference: {max_err}"

    print("KERNEL_OK")
</pallas_src>

<mosaic_0001>
module attributes {stable_mosaic.version = 11 : i64} {
  func.func @_bert_output_kernel(%arg0: i32, %arg1: memref<8x512xf32, #tpu.memory_space<vmem>>, %arg2: memref<512x128xbf16, #tpu.memory_space<vmem>>, %arg3: memref<8x128xf32, #tpu.memory_space<vmem>>, %arg4: memref<3x128xf32, #tpu.memory_space<vmem>>, %arg5: memref<8x128xf32, #tpu.memory_space<vmem>>) attributes {dimension_semantics = [#tpu.dimension_semantics<parallel>], iteration_bounds = array<i64: 2>, scalar_prefetch = 0 : i64, scratch_operands = 0 : i64, tpu.core_type = #tpu.core_type<tc>, window_params = [{transform_indices = @transform_0, window_bounds = array<i64: 8, 512>}, {pipeline_mode = #tpu.pipeline_mode<synchronous>, transform_indices = @transform_1, window_bounds = array<i64: 512, 128>}, {transform_indices = @transform_2, window_bounds = array<i64: 8, 128>}, {pipeline_mode = #tpu.pipeline_mode<synchronous>, transform_indices = @transform_3, window_bounds = array<i64: 3, 128>}, {transform_indices = @transform_4, window_bounds = array<i64: 8, 128>}]} {
    %c0 = arith.constant 0 : index
    %c0_0 = arith.constant 0 : index
    %0 = vector.load %arg1[%c0, %c0_0] : memref<8x512xf32, #tpu.memory_space<vmem>>, vector<8x512xf32>
    %1 = arith.truncf %0 : vector<8x512xf32> to vector<8x512xbf16>
    %c0_1 = arith.constant 0 : index
    %c0_2 = arith.constant 0 : index
    %2 = vector.load %arg2[%c0_1, %c0_2] : memref<512x128xbf16, #tpu.memory_space<vmem>>, vector<512x128xbf16>
    %cst = arith.constant dense<0.000000e+00> : vector<8x128xf32>
    %3 = tpu.matmul %1, %2, %cst {dimension_numbers = #tpu.dot_dimension_numbers<[1], [0], [0], [1], [0, 0, 1, 1], [], []>} : vector<8x512xbf16>, vector<512x128xbf16>, vector<8x128xf32> -> vector<8x128xf32>
    %c0_3 = arith.constant 0 : index
    %c0_4 = arith.constant 0 : index
    %4 = vector.load %arg4[%c0_3, %c0_4] : memref<3x128xf32, #tpu.memory_space<vmem>>, vector<3x128xf32>
    %5 = vector.extract_strided_slice %4 {offsets = [0, 0], sizes = [1, 128], strides = [1, 1]} : vector<3x128xf32> to vector<1x128xf32>
    %6 = vector.broadcast %5 : vector<1x128xf32> to vector<8x128xf32>
    %7 = arith.addf %3, %6 : vector<8x128xf32>
    %c0_5 = arith.constant 0 : index
    %c0_6 = arith.constant 0 : index
    %8 = vector.load %arg3[%c0_5, %c0_6] : memref<8x128xf32, #tpu.memory_space<vmem>>, vector<8x128xf32>
    %9 = arith.addf %7, %8 : vector<8x128xf32>
    %cst_7 = arith.constant dense<0.000000e+00> : vector<8xf32>
    %10 = vector.multi_reduction <add>, %9, %cst_7 [1] : vector<8x128xf32> to vector<8xf32>
    %11 = vector.shape_cast %10 : vector<8xf32> to vector<8x1xf32>
    %cst_8 = arith.constant 1.280000e+02 : f32
    %12 = vector.broadcast %cst_8 : f32 to vector<8x1xf32>
    %13 = arith.divf %11, %12 : vector<8x1xf32>
    %14 = vector.broadcast %13 : vector<8x1xf32> to vector<8x128xf32>
    %15 = arith.subf %9, %14 : vector<8x128xf32>
    %16 = arith.mulf %15, %15 : vector<8x128xf32>
    %cst_9 = arith.constant dense<0.000000e+00> : vector<8xf32>
    %17 = vector.multi_reduction <add>, %16, %cst_9 [1] : vector<8x128xf32> to vector<8xf32>
    %18 = vector.shape_cast %17 : vector<8xf32> to vector<8x1xf32>
    %cst_10 = arith.constant 1.280000e+02 : f32
    %19 = vector.broadcast %cst_10 : f32 to vector<8x1xf32>
    %20 = arith.divf %18, %19 : vector<8x1xf32>
    %cst_11 = arith.constant 9.99999996E-13 : f32
    %21 = vector.broadcast %cst_11 : f32 to vector<8x1xf32>
    %22 = arith.addf %20, %21 : vector<8x1xf32>
    %23 = math.rsqrt %22 : vector<8x1xf32>
    %24 = vector.broadcast %23 : vector<8x1xf32> to vector<8x128xf32>
    %25 = arith.mulf %15, %24 : vector<8x128xf32>
    %26 = vector.extract_strided_slice %4 {offsets = [1, 0], sizes = [1, 128], strides = [1, 1]} : vector<3x128xf32> to vector<1x128xf32>
    %27 = vector.broadcast %26 : vector<1x128xf32> to vector<8x128xf32>
    %28 = arith.mulf %25, %27 : vector<8x128xf32>
    %29 = vector.extract_strided_slice %4 {offsets = [2, 0], sizes = [1, 128], strides = [1, 1]} : vector<3x128xf32> to vector<1x128xf32>
    %30 = vector.broadcast %29 : vector<1x128xf32> to vector<8x128xf32>
    %31 = arith.addf %28, %30 : vector<8x128xf32>
    %c0_12 = arith.constant 0 : index
    %c0_13 = arith.constant 0 : index
    %32 = vector.load %arg5[%c0_12, %c0_13] : memref<8x128xf32, #tpu.memory_space<vmem>>, vector<8x128xf32>
    tpu.vector_store %arg5[%c0_12, %c0_13], %31 {strides = array<i32>} : memref<8x128xf32, #tpu.memory_space<vmem>>, vector<8x128xf32>,
    return
  }
  func.func @transform_0(%arg0: i32) -> (i32, i32) {
    %c0_i32 = arith.constant 0 : i32
    %c0_i32_0 = arith.constant 0 : i32
    return %arg0, %c0_i32 : i32, i32
  }
  func.func @transform_1(%arg0: i32) -> (i32, i32) {
    %c0_i32 = arith.constant 0 : i32
    %c0_i32_0 = arith.constant 0 : i32
    %c0_i32_1 = arith.constant 0 : i32
    return %c0_i32, %c0_i32_0 : i32, i32
  }
  func.func @transform_2(%arg0: i32) -> (i32, i32) {
    %c0_i32 = arith.constant 0 : i32
    %c0_i32_0 = arith.constant 0 : i32
    return %arg0, %c0_i32 : i32, i32
  }
  func.func @transform_3(%arg0: i32) -> (i32, i32) {
    %c0_i32 = arith.constant 0 : i32
    %c0_i32_0 = arith.constant 0 : i32
    %c0_i32_1 = arith.constant 0 : i32
    return %c0_i32, %c0_i32_0 : i32, i32
  }
  func.func @transform_4(%arg0: i32) -> (i32, i32) {
    %c0_i32 = arith.constant 0 : i32
    %c0_i32_0 = arith.constant 0 : i32
    return %arg0, %c0_i32 : i32, i32
  }
}

</mosaic_0001>

<llo_original>
// kernel: bert_output.1
$region0: #{bert_output.1}
  #allocation0 [shape = 'u32[]', space=smem, size = 0x4, offset = 0x4, fixed_abs, tag = 'smem constant byte address 0x4 - core index']
  #allocation1 [shape = 'u32[144,128]{1,0:T(1,128)}', space=vmem, size = 0x12000, scoped, tag = 'internal scratch']
  %s0 = inlined_call_operand.hbm [shape: f32[16,512], index: 0, kind: input, shape index: {}]
  %s1 = inlined_call_operand.hbm [shape: bf16[512,128], index: 1, kind: input, shape index: {}]
  %s2 = inlined_call_operand.vmem [shape: f32[16,128], index: 2, kind: input, shape index: {}]
  %s3 = inlined_call_operand.vmem [shape: f32[3,128], index: 3, kind: input, shape index: {}]
  %s4 = inlined_call_operand.hbm [shape: f32[16,128], index: 4, kind: output, shape index: {}]
  %s5 = sld [smem:[#allocation0]]
  $region57: #{bert_output.1} parent=0
    _
  %s7 = ssub.s32 1, %s5
  %s8 = scalar_select 0, %s7, %s5
  $region1: #{bert_output.1} parent=0
    #allocation2 [shape = 'u8[32768]{0}', space=vmem, size = 0x8000, scoped, tag = 'input window, operand 0']
    #allocation3 [shape = 's32[2]{0}', space=sflag, size = 0x8, scoped, tag = 'scoped memory for bert_output.1']
    #allocation4 [shape = 's32[2]{0}', space=sflag, size = 0x8, scoped, tag = 'scoped memory for bert_output.1']
    #allocation5 [shape = 'u8[131072]{0}', space=vmem, size = 0x20000, scoped, tag = 'input window, operand 1, single buffered']
    #allocation6 [shape = 's32[1]{0}', space=sflag, size = 0x4, scoped, tag = 'scoped memory for bert_output.1']
    #allocation7 [shape = 'u8[8192]{0}', space=vmem, size = 0x2000, scoped, tag = 'output window, operand 0']
    %9 = vsyncpa [#allocation3], 0
    %s10 = scalar_lea.sflag [#allocation3], 1
    %11 = vsyncpa %s10, 0
    %12 = vsyncpa [#allocation6], 0
    %13 = vsyncpa [#allocation4], 0
    %s14 = scalar_lea.sflag [#allocation4], 1
    %15 = vsyncpa %s14, 0
    loop: start=0, step=1, limit=4
    $region2: #{bert_output.1} parent=1 // loop_pre_header
      _
    $region3: #{bert_output.1} parent=1 // loop_header
      %s17 = sphi 0, %s21
      %p18 = scmp.ge.s32.totalorder %s17, 4
      %s27 = sphi 0, %s29
      %s30 = sphi 0, %s27
      %s31 = sphi 0, %s30
      %s47 = sphi 0, %s31
      %s51 = sphi 0, %s51
      %s53 = sphi 0, %s51
      %s54 = sphi 0, %s53
      %s68 = sphi 0, %s54
      %s74 = sphi 0, %s76
      %s77 = sphi 0, %s74
      %s78 = sphi 0, %s77
      %s94 = sphi 0, %s78
      %s98 = sphi 0, %s98
      %s100 = sphi 0, %s98
      %s101 = sphi 0, %s100
      %s115 = sphi 0, %s101
      %s121 = sphi 0, %s123
      %s124 = sphi 0, %s121
      %s125 = sphi 0, %s124
      %s141 = sphi 0, %s125
    $region4: #{bert_output.1} parent=1 // loop_header_branch
      %20 = sbr.rel (%p18) target = $region8
    $region5: #{bert_output.1} parent=1 // loop_body
      %s22 = ssub.s32 %s17, 1
      %s23 = ssub.s32 %s17, 2
      %s24 = sadd.s32 %s17, 1
      %s25 = ssub.s32 %s17, %s24
      %p26 = scmp.eq.s32.totalorder %s25, 0
      %s28 = sadd.s32 %s27, 1
      %s29 = scalar_select %p26, %s27, %s28
      %p32 = pneg %p26
      %p33 = scmp.eq.s32.totalorder %s17, 1
      %p34 = por %p32, %p33
      %p35 = scmp.ne.s32.totalorder %s27, %s30
      %p36 = scmp.eq.s32.totalorder %s17, 0
      %p37 = por %p35, %p36
      %p38 = scmp.ne.s32.totalorder %s27, %s30
      %p39 = scmp.eq.s32.totalorder %s22, 1
      %p40 = por %p38, %p39
      %p41 = scmp.ne.s32.totalorder %s30, %s31
      %p42 = scmp.eq.s32.totalorder %s22, 0
      %p43 = por %p41, %p42
      %p44 = scmp.ne.s32.totalorder %s30, %s31
      %p45 = scmp.eq.s32.totalorder %s23, 1
      %p46 = por %p44, %p45
      %p48 = scmp.ne.s32.totalorder %s31, %s47
      %p49 = scmp.eq.s32.totalorder %s23, 0
      %p50 = por %p48, %p49
      %s52 = sadd.s32 %s51, 1
      %p55 = scmp.eq.s32.totalorder %s17, 1
      %p56 = scmp.ne.s32.totalorder %s51, %s53
      %p57 = scmp.eq.s32.totalorder %s17, 0
      %p58 = por %p56, %p57
      %p59 = scmp.ne.s32.totalorder %s51, %s53
      %p60 = scmp.eq.s32.totalorder %s22, 1
      %p61 = por %p59, %p60
      %p62 = scmp.ne.s32.totalorder %s53, %s54
      %p63 = scmp.eq.s32.totalorder %s22, 0
      %p64 = por %p62, %p63
      %p65 = scmp.ne.s32.totalorder %s53, %s54
      %p66 = scmp.eq.s32.totalorder %s23, 1
      %p67 = por %p65, %p66
      %p69 = scmp.ne.s32.totalorder %s54, %s68
      %p70 = scmp.eq.s32.totalorder %s23, 0
      %p71 = por %p69, %p70
      %s72 = ssub.s32 %s17, %s24
      %p73 = scmp.eq.s32.totalorder %s72, 0
      %s75 = sadd.s32 %s74, 1
      %s76 = scalar_select %p73, %s74, %s75
      %p79 = pneg %p73
      %p80 = scmp.eq.s32.totalorder %s17, 1
      %p81 = por %p79, %p80
      %p82 = scmp.ne.s32.totalorder %s74, %s77
      %p83 = scmp.eq.s32.totalorder %s17, 0
      %p84 = por %p82, %p83
      %p85 = scmp.ne.s32.totalorder %s74, %s77
      %p86 = scmp.eq.s32.totalorder %s22, 1
      %p87 = por %p85, %p86
      %p88 = scmp.ne.s32.totalorder %s77, %s78
      %p89 = scmp.eq.s32.totalorder %s22, 0
      %p90 = por %p88, %p89
      %p91 = scmp.ne.s32.totalorder %s77, %s78
      %p92 = scmp.eq.s32.totalorder %s23, 1
      %p93 = por %p91, %p92
      %p95 = scmp.ne.s32.totalorder %s78, %s94
      %p96 = scmp.eq.s32.totalorder %s23, 0
      %p97 = por %p95, %p96
      %s99 = sadd.s32 %s98, 1
      %p102 = scmp.eq.s32.totalorder %s17, 1
      %p103 = scmp.ne.s32.totalorder %s98, %s100
      %p104 = scmp.eq.s32.totalorder %s17, 0
      %p105 = por %p103, %p104
      %p106 = scmp.ne.s32.totalorder %s98, %s100
      %p107 = scmp.eq.s32.totalorder %s22, 1
      %p108 = por %p106, %p107
      %p109 = scmp.ne.s32.totalorder %s100, %s101
      %p110 = scmp.eq.s32.totalorder %s22, 0
      %p111 = por %p109, %p110
      %p112 = scmp.ne.s32.totalorder %s100, %s101
      %p113 = scmp.eq.s32.totalorder %s23, 1
      %p114 = por %p112, %p113
      %p116 = scmp.ne.s32.totalorder %s101, %s115
      %p117 = scmp.eq.s32.totalorder %s23, 0
      %p118 = por %p116, %p117
      %s119 = ssub.s32 %s17, %s24
      %p120 = scmp.eq.s32.totalorder %s119, 0
      %s122 = sadd.s32 %s121, 1
      %s123 = scalar_select %p120, %s121, %s122
      %p126 = pneg %p120
      %p127 = scmp.eq.s32.totalorder %s17, 1
      %p128 = por %p126, %p127
      %p129 = scmp.ne.s32.totalorder %s121, %s124
      %p130 = scmp.eq.s32.totalorder %s17, 0
      %p131 = por %p129, %p130
      %p132 = scmp.ne.s32.totalorder %s121, %s124
      %p133 = scmp.eq.s32.totalorder %s22, 1
      %p134 = por %p132, %p133
      %p135 = scmp.ne.s32.totalorder %s124, %s125
      %p136 = scmp.eq.s32.totalorder %s22, 0
      %p137 = por %p135, %p136
      %p138 = scmp.ne.s32.totalorder %s124, %s125
      %p139 = scmp.eq.s32.totalorder %s23, 1
      %p140 = por %p138, %p139
      %p142 = scmp.ne.s32.totalorder %s125, %s141
      %p143 = scmp.eq.s32.totalorder %s23, 0
      %p144 = por %p142, %p143
      %p145 = scmp.le.s32.totalorder 1, %s17
      %p146 = scmp.lt.s32.totalorder %s17, 3
      %p147 = pnand %p145, %p146
      %p148 = pneg %p147
      // Predicated region
      $region9: #{bert_output.1} parent=5 // pred_check
        _
      $region10: #{bert_output.1} parent=5 // pred_check_branch
        %150 = sbr.rel (%p147) target = $region12
      $region11: #{bert_output.1} parent=5 // pred_region
        %s151 = ssub.s32 %s17, 1
        // Predicated region
        $region13: #{bert_output.1} parent=11 // pred_check
          %p152 = pneg %p64
        $region14: #{bert_output.1} parent=11 // pred_check_branch
          %154 = sbr.rel (%p152) target = $region16
        $region15: #{bert_output.1} parent=11 // pred_region
          %s156 = ssub.s32 4096, 4096
          %157 = vsyncadd [#allocation6], %s156
          %s158 = sshll.u32 [#allocation5], 4
          %s159 = int_to_ptr.vmem [resolvable:$true] %s158
          %164 = dma.hbm_to_vmem [thread:$0]  %s1, 4096, %s159, [#allocation6], 64, 64, 4
        $region16: #{bert_output.1} parent=11 // pred_fallthru
          _
        // Predicated region
        $region17: #{bert_output.1} parent=11 // pred_check
          %p165 = pneg %p111
        $region18: #{bert_output.1} parent=11 // pred_check_branch
          %167 = sbr.rel (%p165) target = $region20
        $region19: #{bert_output.1} parent=11 // pred_region
          _
        $region20: #{bert_output.1} parent=11 // pred_fallthru
          _
      $region12: #{bert_output.1} parent=5 // pred_fallthru
        _
      %p168 = scmp.lt.s32.totalorder %s17, 2
      // Predicated region
      $region21: #{bert_output.1} parent=5 // pred_check
        %p169 = pneg %p168
      $region22: #{bert_output.1} parent=5 // pred_check_branch
        %171 = sbr.rel (%p169) target = $region24
      $region23: #{bert_output.1} parent=5 // pred_region
        // Predicated region
        $region25: #{bert_output.1} parent=23 // pred_check
          %p172 = pneg %p37
        $region26: #{bert_output.1} parent=23 // pred_check_branch
          %174 = sbr.rel (%p172) target = $region28
        $region27: #{bert_output.1} parent=23 // pred_region
          %s175 = sand.u32 %s27, 1
          %s176 = scalar_lea.sflag [#allocation3], %s175
          %s177 = sand.u32 %s27, 1
          %s178 = smul.addr %s177, 32
          %s179 = scalar_lea.vmem [#allocation2], %s178
          %s181 = ssub.s32 512, 512
          %182 = vsyncadd %s176, %s181
          %s183 = smul.addr %s17, 4
          %s184 = smul.addr %s183, 128
          %s185 = scalar_lea.hbm %s0, %s184
          %s187 = sshll.u32 %s179, 4
          %s188 = int_to_ptr.vmem [resolvable:$true] %s187
          %190 = dma.hbm_to_vmem [thread:$0]  %s185, 512, %s188, %s176
        $region28: #{bert_output.1} parent=23 // pred_fallthru
          _
        // Predicated region
        $region29: #{bert_output.1} parent=23 // pred_check
          %p191 = pneg %p84
        $region30: #{bert_output.1} parent=23 // pred_check_branch
          %193 = sbr.rel (%p191) target = $region32
        $region31: #{bert_output.1} parent=23 // pred_region
          %p194 = scmp.lt.s32.totalorder %s17, 1
          %s195 = scalar_select %p194, %s17, 1
          %s196 = smul.addr %s195, 8
          %s197 = scalar_lea.vmem %s2, %s196
        $region32: #{bert_output.1} parent=23 // pred_fallthru
          _
      $region24: #{bert_output.1} parent=5 // pred_fallthru
        _
      %p198 = scmp.le.s32.totalorder 1, %s17
      %p199 = scmp.lt.s32.totalorder %s17, 3
      %p200 = pnand %p198, %p199
      %p201 = pneg %p200
      // Predicated region
      $region33: #{bert_output.1} parent=5 // pred_check
        _
      $region34: #{bert_output.1} parent=5 // pred_check_branch
        %203 = sbr.rel (%p200) target = $region36
      $region35: #{bert_output.1} parent=5 // pred_region
        %s204 = ssub.s32 %s17, 1
        %s205 = sand.u32 %s30, 1
        %s206 = scalar_lea.sflag [#allocation3], %s205
        %s207 = sand.u32 %s30, 1
        %s208 = smul.addr %s207, 32
        %s209 = scalar_lea.vmem [#allocation2], %s208
        // Predicated region
        $region37: #{bert_output.1} parent=35 // pred_check
          %p210 = pneg %p43
        $region38: #{bert_output.1} parent=35 // pred_check_branch
          %212 = sbr.rel (%p210) target = $region40
        $region39: #{bert_output.1} parent=35 // pred_region
          %213 = dma.done %s206, 512
        $region40: #{bert_output.1} parent=35 // pred_fallthru
          _
        // Predicated region
        $region41: #{bert_output.1} parent=35 // pred_check
          %p214 = pneg %p64
        $region42: #{bert_output.1} parent=35 // pred_check_branch
          %216 = sbr.rel (%p214) target = $region44
        $region43: #{bert_output.1} parent=35 // pred_region
          %217 = dma.done [#allocation6], 4096
        $region44: #{bert_output.1} parent=35 // pred_fallthru
          _
        %s218 = sand.u32 %s30, 1
        %s219 = scalar_lea.sflag [#allocation3], %s218
        %s220 = sand.u32 %s30, 1
        %s221 = smul.addr %s220, 32
        %s222 = scalar_lea.vmem [#allocation2], %s221
        %p223 = pneg %p43
        %p224 = pneg %p40
        %p225 = pneg %p64
        %p226 = pneg %p61
        %p227 = scmp.lt.s32.totalorder %s22, 1
        %s228 = scalar_select %p227, %s22, 1
        %s229 = smul.addr %s228, 8
        %s230 = scalar_lea.vmem %s2, %s229
        %p231 = pneg %p90
        %p232 = pneg %p87
        %p233 = pneg %p111
        %p234 = pneg %p108
        %p235 = pneg %p137
        %p236 = pneg %p134
        %s237 = sand.u32 %s124, 1
        %s238 = scalar_lea.sflag [#allocation4], %s237
        %s239 = sand.u32 %s124, 1
        %s240 = smul.addr %s239, 8
        %s241 = scalar_lea.vmem [#allocation7], %s240
        %p242 = scmp.lt.s32.totalorder %s22, 1
        %s243 = scalar_select %p242, %s22, 1
        %s244 = smul.addr %s243, 8
        %s245 = scalar_lea.vmem %s2, %s244
        %v247 = vld [vmem:[%s209] sm:$0xff]
        %v248 = vld [vmem:[%s209 + $0x8] sm:$0xff]
        %v249 = vld [vmem:[%s209 + $0x10] sm:$0xff]
        %v250 = vld [vmem:[%s209 + $0x18] sm:$0xff]
        %v251 = vpack.c.bf16 %v247, %v247
        %v252 = vpack.c.bf16 %v248, %v248
        %v253 = vpack.c.bf16 %v249, %v249
        %v254 = vpack.c.bf16 %v250, %v250
        %v255 = vld [vmem:[#allocation5] sm:$0xf]
        %v256 = vld [vmem:[#allocation5 + $0x4] sm:$0xf]
        %v257 = vld [vmem:[#allocation5 + $0x8] sm:$0xf]
        %v258 = vld [vmem:[#allocation5 + $0xc] sm:$0xf]
        %v259 = vld [vmem:[#allocation5 + $0x10] sm:$0xf]
        %v260 = vld [vmem:[#allocation5 + $0x14] sm:$0xf]
        %v261 = vld [vmem:[#allocation5 + $0x18] sm:$0xf]
        %v262 = vld [vmem:[#allocation5 + $0x1c] sm:$0xf]
        %v263 = vld [vmem:[#allocation5 + $0x20] sm:$0xf]
        %v264 = vld [vmem:[#allocation5 + $0x24] sm:$0xf]
        %v265 = vld [vmem:[#allocation5 + $0x28] sm:$0xf]
        %v266 = vld [vmem:[#allocation5 + $0x2c] sm:$0xf]
        %v267 = vld [vmem:[#allocation5 + $0x30] sm:$0xf]
        %v268 = vld [vmem:[#allocation5 + $0x34] sm:$0xf]
        %v269 = vld [vmem:[#allocation5 + $0x38] sm:$0xf]
        %v270 = vld [vmem:[#allocation5 + $0x3c] sm:$0xf]
        %v271 = vld [vmem:[#allocation5 + $0x40] sm:$0xf]
        %v272 = vld [vmem:[#allocation5 + $0x44] sm:$0xf]
        %v273 = vld [vmem:[#allocation5 + $0x48] sm:$0xf]
        %v274 = vld [vmem:[#allocation5 + $0x4c] sm:$0xf]
        %v275 = vld [vmem:[#allocation5 + $0x50] sm:$0xf]
        %v276 = vld [vmem:[#allocation5 + $0x54] sm:$0xf]
        %v277 = vld [vmem:[#allocation5 + $0x58] sm:$0xf]
        %v278 = vld [vmem:[#allocation5 + $0x5c] sm:$0xf]
        %v279 = vld [vmem:[#allocation5 + $0x60] sm:$0xf]
        %v280 = vld [vmem:[#allocation5 + $0x64] sm:$0xf]
        %v281 = vld [vmem:[#allocation5 + $0x68] sm:$0xf]
        %v282 = vld [vmem:[#allocation5 + $0x6c] sm:$0xf]
        %v283 = vld [vmem:[#allocation5 + $0x70] sm:$0xf]
        %v284 = vld [vmem:[#allocation5 + $0x74] sm:$0xf]
        %v285 = vld [vmem:[#allocation5 + $0x78] sm:$0xf]
        %v286 = vld [vmem:[#allocation5 + $0x7c] sm:$0xf]
        %v287 = vld [vmem:[#allocation5 + $0x80] sm:$0xf]
        %v288 = vld [vmem:[#allocation5 + $0x84] sm:$0xf]
        %v289 = vld [vmem:[#allocation5 + $0x88] sm:$0xf]
        %v290 = vld [vmem:[#allocation5 + $0x8c] sm:$0xf]
        %v291 = vld [vmem:[#allocation5 + $0x90] sm:$0xf]
        %v292 = vld [vmem:[#allocation5 + $0x94] sm:$0xf]
        %v293 = vld [vmem:[#allocation5 + $0x98] sm:$0xf]
        %v294 = vld [vmem:[#allocation5 + $0x9c] sm:$0xf]
        %v295 = vld [vmem:[#allocation5 + $0xa0] sm:$0xf]
        %v296 = vld [vmem:[#allocation5 + $0xa4] sm:$0xf]
        %v297 = vld [vmem:[#allocation5 + $0xa8] sm:$0xf]
        %v298 = vld [vmem:[#allocation5 + $0xac] sm:$0xf]
        %v299 = vld [vmem:[#allocation5 + $0xb0] sm:$0xf]
        %v300 = vld [vmem:[#allocation5 + $0xb4] sm:$0xf]
        %v301 = vld [vmem:[#allocation5 + $0xb8] sm:$0xf]
        %v302 = vld [vmem:[#allocation5 + $0xbc] sm:$0xf]
        %v303 = vld [vmem:[#allocation5 + $0xc0] sm:$0xf]
        %v304 = vld [vmem:[#allocation5 + $0xc4] sm:$0xf]
        %v305 = vld [vmem:[#allocation5 + $0xc8] sm:$0xf]
        %v306 = vld [vmem:[#allocation5 + $0xcc] sm:$0xf]
        %v307 = vld [vmem:[#allocation5 + $0xd0] sm:$0xf]
        %v308 = vld [vmem:[#allocation5 + $0xd4] sm:$0xf]
        %v309 = vld [vmem:[#allocation5 + $0xd8] sm:$0xf]
        %v310 = vld [vmem:[#allocation5 + $0xdc] sm:$0xf]
        %v311 = vld [vmem:[#allocation5 + $0xe0] sm:$0xf]
        %v312 = vld [vmem:[#allocation5 + $0xe4] sm:$0xf]
        %v313 = vld [vmem:[#allocation5 + $0xe8] sm:$0xf]
        %v314 = vld [vmem:[#allocation5 + $0xec] sm:$0xf]
        %v315 = vld [vmem:[#allocation5 + $0xf0] sm:$0xf]
        %v316 = vld [vmem:[#allocation5 + $0xf4] sm:$0xf]
        %v317 = vld [vmem:[#allocation5 + $0xf8] sm:$0xf]
        %v318 = vld [vmem:[#allocation5 + $0xfc] sm:$0xf]
        %v319 = vld [vmem:[%s3] sm:$0x7]
        %v320 = vlaneseq
        %v321 = vshrl.u32 %v320, 7
        %v322 = vsub.s32 0, %v321
        %v323 = vrot.slane %v319, %v322
        %v388 = vunpack.c.l.b16 %v255
        %v389 = vunpack.c.l.b16 %v256
        %v390 = vunpack.c.l.b16 %v257
        %v391 = vunpack.c.l.b16 %v258
        %v392 = vunpack.c.l.b16 %v259
        %v393 = vunpack.c.l.b16 %v260
        %v394 = vunpack.c.l.b16 %v261
        %v395 = vunpack.c.l.b16 %v262
        %v396 = vunpack.c.l.b16 %v263
        %v397 = vunpack.c.l.b16 %v264
        %v398 = vunpack.c.l.b16 %v265
        %v399 = vunpack.c.l.b16 %v266
        %v400 = vunpack.c.l.b16 %v267
        %v401 = vunpack.c.l.b16 %v268
        %v402 = vunpack.c.l.b16 %v269
        %v403 = vunpack.c.l.b16 %v270
        %v404 = vunpack.c.l.b16 %v271
        %v405 = vunpack.c.l.b16 %v272
        %v406 = vunpack.c.l.b16 %v273
        %v407 = vunpack.c.l.b16 %v274
        %v408 = vunpack.c.l.b16 %v275
        %v409 = vunpack.c.l.b16 %v276
        %v410 = vunpack.c.l.b16 %v277
        %v411 = vunpack.c.l.b16 %v278
        %v412 = vunpack.c.l.b16 %v279
        %v413 = vunpack.c.l.b16 %v280
        %v414 = vunpack.c.l.b16 %v281
        %v415 = vunpack.c.l.b16 %v282
        %v416 = vunpack.c.l.b16 %v283
        %v417 = vunpack.c.l.b16 %v284
        %v418 = vunpack.c.l.b16 %v285
        %v419 = vunpack.c.l.b16 %v286
        %v420 = vunpack.c.l.b16 %v287
        %v421 = vunpack.c.l.b16 %v288
        %v422 = vunpack.c.l.b16 %v289
        %v423 = vunpack.c.l.b16 %v290
        %v424 = vunpack.c.l.b16 %v291
        %v425 = vunpack.c.l.b16 %v292
        %v426 = vunpack.c.l.b16 %v293
        %v427 = vunpack.c.l.b16 %v294
        %v428 = vunpack.c.l.b16 %v295
        %v429 = vunpack.c.l.b16 %v296
        %v430 = vunpack.c.l.b16 %v297
        %v431 = vunpack.c.l.b16 %v298
        %v432 = vunpack.c.l.b16 %v299
        %v433 = vunpack.c.l.b16 %v300
        %v434 = vunpack.c.l.b16 %v301
        %v435 = vunpack.c.l.b16 %v302
        %v436 = vunpack.c.l.b16 %v303
        %v437 = vunpack.c.l.b16 %v304
        %v438 = vunpack.c.l.b16 %v305
        %v439 = vunpack.c.l.b16 %v306
        %v440 = vunpack.c.l.b16 %v307
        %v441 = vunpack.c.l.b16 %v308
        %v442 = vunpack.c.l.b16 %v309
        %v443 = vunpack.c.l.b16 %v310
        %v444 = vunpack.c.l.b16 %v311
        %v445 = vunpack.c.l.b16 %v312
        %v446 = vunpack.c.l.b16 %v313
        %v447 = vunpack.c.l.b16 %v314
        %v448 = vunpack.c.l.b16 %v315
        %v449 = vunpack.c.l.b16 %v316
        %v450 = vunpack.c.l.b16 %v317
        %v451 = vunpack.c.l.b16 %v318
        %v452 = vpack.c.b16 %v389, %v388
        %v453 = vpack.c.b16 %v391, %v390
        %v454 = vpack.c.b16 %v393, %v392
        %v455 = vpack.c.b16 %v395, %v394
        %v456 = vpack.c.b16 %v397, %v396
        %v457 = vpack.c.b16 %v399, %v398
        %v458 = vpack.c.b16 %v401, %v400
        %v459 = vpack.c.b16 %v403, %v402
        %v460 = vpack.c.b16 %v405, %v404
        %v461 = vpack.c.b16 %v407, %v406
        %v462 = vpack.c.b16 %v409, %v408
        %v463 = vpack.c.b16 %v411, %v410
        %v464 = vpack.c.b16 %v413, %v412
        %v465 = vpack.c.b16 %v415, %v414
        %v466 = vpack.c.b16 %v417, %v416
        %v467 = vpack.c.b16 %v419, %v418
        %v468 = vpack.c.b16 %v421, %v420
        %v469 = vpack.c.b16 %v423, %v422
        %v470 = vpack.c.b16 %v425, %v424
        %v471 = vpack.c.b16 %v427, %v426
        %v472 = vpack.c.b16 %v429, %v428
        %v473 = vpack.c.b16 %v431, %v430
        %v474 = vpack.c.b16 %v433, %v432
        %v475 = vpack.c.b16 %v435, %v434
        %v476 = vpack.c.b16 %v437, %v436
        %v477 = vpack.c.b16 %v439, %v438
        %v478 = vpack.c.b16 %v441, %v440
        %v479 = vpack.c.b16 %v443, %v442
        %v480 = vpack.c.b16 %v445, %v444
        %v481 = vpack.c.b16 %v447, %v446
        %v482 = vpack.c.b16 %v449, %v448
        %v483 = vpack.c.b16 %v451, %v450
        %516 = vmatprep.subr.bf16.mxu0 0
        %517 = vmatpush1.bf16.msra.mxu0 %v452
        %518 = vmatprep.subr.bf16.mxu0 0
        %519 = vmatpush1.bf16.msra.mxu0 %v453
        %520 = vmatprep.subr.bf16.mxu0 0
        %521 = vmatpush1.bf16.msra.mxu0 %v454
        %522 = vmatprep.subr.bf16.mxu0 0
        %523 = vmatpush1.bf16.msra.mxu0 %v455
        %524 = vmatprep.subr.bf16.mxu0 0
        %525 = vmatpush1.bf16.msra.mxu0 %v456
        %526 = vmatprep.subr.bf16.mxu0 0
        %527 = vmatpush1.bf16.msra.mxu0 %v457
        %528 = vmatprep.subr.bf16.mxu0 0
        %529 = vmatpush1.bf16.msra.mxu0 %v458
        %530 = vmatprep.subr.bf16.mxu0 0
        %531 = vmatpush1.bf16.msra.mxu0 %v459
        %532 = vmatprep.subr.bf16.mxu0 0
        %533 = vmatpush1.bf16.msra.mxu0 %v460
        %534 = vmatprep.subr.bf16.mxu0 0
        %535 = vmatpush1.bf16.msra.mxu0 %v461
        %536 = vmatprep.subr.bf16.mxu0 0
        %537 = vmatpush1.bf16.msra.mxu0 %v462
        %538 = vmatprep.subr.bf16.mxu0 0
        %539 = vmatpush1.bf16.msra.mxu0 %v463
        %540 = vmatprep.subr.bf16.mxu0 0
        %541 = vmatpush1.bf16.msra.mxu0 %v464
        %542 = vmatprep.subr.bf16.mxu0 0
        %543 = vmatpush1.bf16.msra.mxu0 %v465
        %544 = vmatprep.subr.bf16.mxu0 0
        %545 = vmatpush1.bf16.msra.mxu0 %v466
        %546 = vmatprep.subr.bf16.mxu0 0
        %547 = vmatpush1.bf16.msra.mxu0 %v467
        %548 = vmatprep.mubr.bf16.mxu0 %v252
        %549 = vmatmul.mubr.bf16.gmra.mrb[0].mxu0 %v251
        %v550 = vpop.f32.mrb[0].mxu0
        %v551 = vadd.f32 %v323, %v550
        %v552 = vpop.f32.mrb[0].mxu0
        %v553 = vpop.f32.mrb[0].mxu0
        %v554 = vpop.f32.mrb[0].mxu0
        %555 = vdwg.mxu0
        %556 = vmatprep.subr.bf16.mxu0 0
        %557 = vmatpush1.bf16.msra.mxu0 %v468
        %558 = vmatprep.subr.bf16.mxu0 0
        %559 = vmatpush1.bf16.msra.mxu0 %v469
        %560 = vmatprep.subr.bf16.mxu0 0
        %561 = vmatpush1.bf16.msra.mxu0 %v470
        %562 = vmatprep.subr.bf16.mxu0 0
        %563 = vmatpush1.bf16.msra.mxu0 %v471
        %564 = vmatprep.subr.bf16.mxu0 0
        %565 = vmatpush1.bf16.msra.mxu0 %v472
        %566 = vmatprep.subr.bf16.mxu0 0
        %567 = vmatpush1.bf16.msra.mxu0 %v473
        %568 = vmatprep.subr.bf16.mxu0 0
        %569 = vmatpush1.bf16.msra.mxu0 %v474
        %570 = vmatprep.subr.bf16.mxu0 0
        %571 = vmatpush1.bf16.msra.mxu0 %v475
        %572 = vmatprep.subr.bf16.mxu0 0
        %573 = vmatpush1.bf16.msra.mxu0 %v476
        %574 = vmatprep.subr.bf16.mxu0 0
        %575 = vmatpush1.bf16.msra.mxu0 %v477
        %576 = vmatprep.subr.bf16.mxu0 0
        %577 = vmatpush1.bf16.msra.mxu0 %v478
        %578 = vmatprep.subr.bf16.mxu0 0
        %579 = vmatpush1.bf16.msra.mxu0 %v479
        %580 = vmatprep.subr.bf16.mxu0 0
        %581 = vmatpush1.bf16.msra.mxu0 %v480
        %582 = vmatprep.subr.bf16.mxu0 0
        %583 = vmatpush1.bf16.msra.mxu0 %v481
        %584 = vmatprep.subr.bf16.mxu0 0
        %585 = vmatpush1.bf16.msra.mxu0 %v482
        %586 = vmatprep.subr.bf16.mxu0 0
        %587 = vmatpush1.bf16.msra.mxu0 %v483
        %588 = vmatprep.mubr.bf16.mxu0 %v254
        %589 = vmatmul.mubr.bf16.gmra.mrb[0].mxu0 %v253
        %v590 = vpop.f32.mrb[0].mxu0
        %v591 = vadd.f32 %v551, %v590
        %v592 = vpop.f32.mrb[0].mxu0
        %v593 = vpop.f32.mrb[0].mxu0
        %v594 = vpop.f32.mrb[0].mxu0
        %595 = vdwg.mxu0
        %v596 = vld [vmem:[%s245] sm:$0xff]
        %v597 = vadd.f32 %v591, %v596
        %598 = vadd.xlane.f32.xlu0 %v597
        %v599 = vpop.xlane.xlu0 %598
        %v600 = vrcp.pop 128.0
        %v601 = vmul.f32 %v599, %v600
        %v602 = vsub.f32 %v597, %v601
        %v603 = vmul.f32 %v602, %v602
        %604 = vadd.xlane.f32.xlu0 %v603
        %v605 = vpop.xlane.xlu0 %604
        %v606 = vmul.f32 %v605, %v600
        %v607 = vadd.f32 %v606, 1e-12
        %v608 = vrsqrt.pop %v607
        %v609 = vmul.f32 %v602, %v608
        %v610 = vlaneseq
        %v611 = vshrl.u32 %v610, 7
        %v612 = vsub.s32 1, %v611
        %v613 = vrot.slane %v319, %v612
        %v614 = vmul.f32 %v609, %v613
        %v615 = vlaneseq
        %v616 = vshrl.u32 %v615, 7
        %v617 = vsub.s32 2, %v616
        %v618 = vrot.slane %v319, %v617
        %v619 = vadd.f32 %v614, %v618
        %620 = vst [vmem:[%s241] sm:$0xff] %v619
        %s621 = sand.u32 %s124, 1
        %s622 = scalar_lea.sflag [#allocation4], %s621
        %s623 = sand.u32 %s124, 1
        %s624 = smul.addr %s623, 8
        %s625 = scalar_lea.vmem [#allocation7], %s624
        // Predicated region
        $region45: #{bert_output.1} parent=35 // pred_check
          %p626 = pneg %p134
        $region46: #{bert_output.1} parent=35 // pred_check_branch
          %628 = sbr.rel (%p626) target = $region48
        $region47: #{bert_output.1} parent=35 // pred_region
          %s630 = ssub.s32 128, 128
          %631 = vsyncadd %s622, %s630
          %s632 = smul.addr %s22, 128
          %s633 = scalar_lea.hbm %s4, %s632
          %s635 = sshll.u32 %s625, 4
          %s636 = int_to_ptr.vmem [resolvable:$true] %s635
          %638 = dma.vmem_to_hbm [thread:$0]  %s636, 128, %s633, %s622
        $region48: #{bert_output.1} parent=35 // pred_fallthru
          _
      $region36: #{bert_output.1} parent=5 // pred_fallthru
        _
      %p639 = scmp.le.s32.totalorder 2, %s17
      // Predicated region
      $region49: #{bert_output.1} parent=5 // pred_check
        %p640 = pneg %p639
      $region50: #{bert_output.1} parent=5 // pred_check_branch
        %642 = sbr.rel (%p640) target = $region52
      $region51: #{bert_output.1} parent=5 // pred_region
        %s643 = ssub.s32 %s17, 2
        // Predicated region
        $region53: #{bert_output.1} parent=51 // pred_check
          %p644 = pneg %p140
        $region54: #{bert_output.1} parent=51 // pred_check_branch
          %646 = sbr.rel (%p644) target = $region56
        $region55: #{bert_output.1} parent=51 // pred_region
          %s647 = sand.u32 %s125, 1
          %s648 = scalar_lea.sflag [#allocation4], %s647
          %s649 = sand.u32 %s125, 1
          %s650 = smul.addr %s649, 8
          %s651 = scalar_lea.vmem [#allocation7], %s650
          %652 = dma.done %s648, 128
        $region56: #{bert_output.1} parent=51 // pred_fallthru
          _
      $region52: #{bert_output.1} parent=5 // pred_fallthru
        _
    $region6: #{bert_output.1} parent=1 // loop_footer
      %s21 = sadd.s32 1, %s17
    $region7: #{bert_output.1} parent=1 // loop_footer_branch
      %16 = sbr.rel target = $region3
    $region8: #{bert_output.1} parent=1 // loop_exit
      _
    %653 = vsyncpa [#allocation3], 1
    %s654 = scalar_lea.sflag [#allocation3], 1
    %655 = vsyncpa %s654, 1
    %656 = vsyncpa [#allocation6], 1
    %657 = vsyncpa [#allocation4], 1
    %s658 = scalar_lea.sflag [#allocation4], 1
    %659 = vsyncpa %s658, 1

</llo_original>
